<compile_context>
chip_gen: v5e
topology: v5e:2x2
jax: 0.10.0
libtpu: 0.0.40
codegen_flags: <defaults>
</compile_context>

<pallas_src>
import functools

import jax
import jax.numpy as jnp
from jax.experimental import pallas as pl
from jax.experimental.pallas import tpu as pltpu


# ----------------------------- Pallas kernel ------------------------------- #

def _backbone_pool_kernel(cols_ref, w_ref, out_ref, acc_ref, *, cc, bf16_swish):
    """Per (group g, batch n, spatial tile s):
         for each C-chunk:  h = cols_tile @ w_chunk (MXU, f32 acc); hw = swish(h)
                            acc[:, chunk] += per-sublane partial row-sums (VPU only)
       at last s: out = 8->1 sublane reduce of acc  (un-normalized GAP partial)
    """
    s = pl.program_id(2)

    @pl.when(s == 0)
    def _init():
        acc_ref[...] = jnp.zeros_like(acc_ref)

    cols = cols_ref[...]                                  # (ts, kpad) bf16
    ts = cols.shape[0]
    c_total = acc_ref.shape[1]

    for ci in range(c_total // cc):                       # static C-chunk loop
        c0 = ci * cc
        h = jnp.dot(cols, w_ref[:, c0:c0 + cc],
                    preferred_element_type=jnp.float32)   # (ts, cc) f32
        # swish(h) = h / (1 + exp(-h)); exp in bf16 on v6e/v7x, approx EUP recip.
        neg = (-h).astype(jnp.bfloat16) if bf16_swish else -h
        gate = pl.reciprocal(1.0 + jnp.exp(neg).astype(jnp.float32), approx=True)
        hw = h * gate
        # Per-sublane partial sums: whole-vreg VPU adds, no per-step XLU / masked RMW.
        acc_ref[:, c0:c0 + cc] += jnp.sum(hw.reshape(ts // 8, 8, cc), axis=0)

    @pl.when(s == pl.num_programs(2) - 1)
    def _finalize():
        out_ref[...] = jnp.sum(acc_ref[...], axis=0, keepdims=True)   # (1, C)


def fused_backbone_pool(cols, w_fused, *, groups, ts, cc, bf16_swish):
    """cols: (N, S_pad, Kpad) bf16; w_fused: (Kpad, C) bf16.
       Returns (groups, N, C) f32 un-normalized GAP partial sums."""
    N, s_pad, kpad = cols.shape
    C = w_fused.shape[1]
    n_sg = s_pad // (ts * groups)            # S tiles per group

    out = pl.pallas_call(
        functools.partial(_backbone_pool_kernel, cc=cc, bf16_swish=bf16_swish),
        out_shape=jax.ShapeDtypeStruct((groups * N, 1, C), jnp.float32),
        grid=(groups, N, n_sg),
        in_specs=[
            pl.BlockSpec((None, ts, kpad), lambda g, n, s: (n, g * n_sg + s, 0)),
            pl.BlockSpec((kpad, C), lambda g, n, s: (0, 0)),
        ],
        out_specs=pl.BlockSpec((None, 1, C), lambda g, n, s: (g * N + n, 0, 0)),
        scratch_shapes=[pltpu.VMEM((8, C), jnp.float32)],     # per-sublane GAP acc
        compiler_params=pltpu.CompilerParams(
            dimension_semantics=("parallel", "parallel", "arbitrary")),
    )(cols, w_fused)
    return out.reshape(groups, N, C)


# ------------------------------- JAX glue ----------------------------------- #

def _round_up(x, m):
    return (x + m - 1) // m * m


def _tpu_kind():
    try:
        dev = jax.devices()[0]
        return dev.device_kind.lower() if dev.platform == "tpu" else ""
    except Exception:
        return ""


def build_patches_nhwc(x_nchw):
    """3x3 / stride-2 / pad-1 patches, channel-last, flattened in (kh, kw, Cin)
    order (the stem weight is transposed to match before the algebraic fold)."""
    N, C, H, W = x_nchw.shape
    Ho = (H + 2 - 3) // 2 + 1
    Wo = (W + 2 - 3) // 2 + 1
    x = jnp.transpose(x_nchw, (0, 2, 3, 1))                      # NHWC
    xp = jnp.pad(x, ((0, 0), (1, 1), (1, 1), (0, 0)))
    cols = jnp.concatenate(
        [xp[:, dy:dy + 2 * Ho:2, dx:dx + 2 * Wo:2, :]
         for dy in range(3) for dx in range(3)],
        axis=-1)                                                 # (N, Ho, Wo, 9*C)
    return cols.reshape(N, Ho * Wo, 9 * C), Ho, Wo


def custom_cnn_forward(x, w_stem, w_proj, w_cls, b_cls, w_depth, b_depth,
                       *, max_tile=None):
    # --- base._conv_stem patches (Conv2d(3, 32, k=3, s=2, p=1, bias=False)) ----
    cols, _, _ = build_patches_nhwc(x)                 # (N, S, 27) f32
    N, S, K = cols.shape

    # --- fold stem conv into the surrogate 32->1280 projection ------------------
    # TODO(synk): surrogate for the EfficientNet-B0 MBConv stack + conv_head.
    cout = w_stem.shape[0]
    w_stem_mat = jnp.transpose(w_stem, (0, 2, 3, 1)).reshape(cout, -1).T   # (27, 32)
    w_fused = w_stem_mat @ w_proj                                          # (27, 1280)
    C = w_fused.shape[1]

    kind = _tpu_kind()
    is_v7 = ("v7" in kind) or ("7x" in kind)
    bf16_swish = is_v7 or ("v6" in kind)               # f32 swish on v5e (no bf16 EUP)

    # --- generation-aware S tile ------------------------------------------------
    cap = 1024 if is_v7 else 2048
    if max_tile is not None:
        cap = max_tile
    ts = min(cap, _round_up(S, 8))
    ts = max(8, ts - ts % 8)

    # v7x with an odd batch: split the S reduction into 2 'parallel' groups so both
    # TensorCores stay busy; partial pools are combined below in XLA.
    groups = 2 if (is_v7 and N % 2 == 1 and S > ts) else 1

    # Chunk the C output dim so the f32 matmul+swish intermediate stays <= ~1 MiB.
    cc = 256 if ts <= 1024 else 128
    cc = min(cc, C)
    assert C % cc == 0

    # --- pad contraction dim to sublanes, spatial dim to the tile*group grid ----
    kpad = _round_up(K, 8)                             # 27 -> 32 (zero rows add 0)
    s_pad = _round_up(S, ts * groups)                  # zero rows: swish(0) == 0
    cols_p = jnp.pad(cols, ((0, 0), (0, s_pad - S), (0, kpad - K))).astype(jnp.bfloat16)
    w_fused_p = jnp.pad(w_fused, ((0, kpad - K), (0, 0))).astype(jnp.bfloat16)

    # --- fused: projection + swish + global-avg-pool (per-group partial sums) ---
    partial = fused_backbone_pool(cols_p, w_fused_p, groups=groups, ts=ts,
                                  cc=cc, bf16_swish=bf16_swish)   # (G, N, C) f32
    pooled = jnp.sum(partial, axis=0) / jnp.float32(S)            # (N, C) f32 GAP

    # --- heads stay f32 in XLA (tiny GEMMs; no padding / VMEM cost) --------------
    return pooled @ w_cls + b_cls, pooled @ w_depth + b_depth


# --------------------------------- main ------------------------------------- #

if __name__ == "__main__":
    key = jax.random.PRNGKey(0)
    ks = jax.random.split(key, 7)

    N, Cin, H, W = 2, 3, 18, 18        # Ho = Wo = 9, S = 81 (exercises S/K padding)
    feature_dim = 1280                 # EfficientNet-B0 _fc.in_features

    x = jax.random.normal(ks[0], (N, Cin, H, W), dtype=jnp.float32)

    # Deterministic parameter init (shapes follow the module's __init__).
    w_stem = 0.10 * jax.random.normal(ks[1], (32, Cin, 3, 3), dtype=jnp.float32)
    w_proj = 0.05 * jax.random.normal(ks[2], (32, feature_dim), dtype=jnp.float32)
    w_cls = 0.10 * jax.random.normal(ks[3], (feature_dim, 2), dtype=jnp.float32)
    b_cls = 0.10 * jax.random.normal(ks[4], (1, 2), dtype=jnp.float32)
    w_depth = 0.10 * jax.random.normal(ks[5], (feature_dim, 4), dtype=jnp.float32)
    b_depth = 0.10 * jax.random.normal(ks[6], (1, 4), dtype=jnp.float32)

    # max_tile=32 so the tiny demo still exercises the multi-step GAP accumulation,
    # the zero-padded S rows (81 -> 96) and the chunked-C inner loop.
    fwd = jax.jit(functools.partial(custom_cnn_forward, max_tile=32))
    cls_out, depth_out = fwd(x, w_stem, w_proj, w_cls, b_cls, w_depth, b_depth)
    jax.block_until_ready((cls_out, depth_out))

    # Pure-JAX f32 reference of the same forward math.
    def reference(x):
        y = jax.lax.conv_general_dilated(
            x, w_stem, window_strides=(2, 2), padding=((1, 1), (1, 1)),
            dimension_numbers=("NCHW", "OIHW", "NCHW"),
            precision=jax.lax.Precision.HIGHEST)                  # (N, 32, 9, 9)
        f = jnp.einsum("nchw,cf->nhwf", y, w_proj,
                       precision=jax.lax.Precision.HIGHEST)       # (N, 9, 9, 1280)
        f = f * jax.nn.sigmoid(f)
        pooled = f.mean(axis=(1, 2))
        return pooled @ w_cls + b_cls, pooled @ w_depth + b_depth

    ref_cls, ref_depth = reference(x)

    assert cls_out.shape == (N, 2), cls_out.shape
    assert depth_out.shape == (N, 4), depth_out.shape
    assert bool(jnp.all(jnp.isfinite(cls_out))) and bool(jnp.all(jnp.isfinite(depth_out)))
    assert bool(jnp.allclose(cls_out, ref_cls, atol=2e-2)), \
        float(jnp.max(jnp.abs(cls_out - ref_cls)))
    assert bool(jnp.allclose(depth_out, ref_depth, atol=2e-2)), \
        float(jnp.max(jnp.abs(depth_out - ref_depth)))
    print("KERNEL_OK")
</pallas_src>

<mosaic_0001>
module attributes {stable_mosaic.version = 11 : i64} {
  func.func @_backbone_pool_kernel(%arg0: i32, %arg1: i32, %arg2: i32, %arg3: memref<1x32x32xbf16, #tpu.memory_space<vmem>>, %arg4: memref<32x1280xbf16, #tpu.memory_space<vmem>>, %arg5: memref<1x1x1280xf32, #tpu.memory_space<vmem>>, %arg6: memref<8x1280xf32, #tpu.memory_space<vmem>>) attributes {dimension_semantics = [#tpu.dimension_semantics<parallel>, #tpu.dimension_semantics<parallel>, #tpu.dimension_semantics<arbitrary>], iteration_bounds = array<i64: 1, 2, 3>, scalar_prefetch = 0 : i64, scratch_operands = 1 : i64, tpu.core_type = #tpu.core_type<tc>, window_params = [{transform_indices = @transform_0, window_bounds = array<i64: 1, 32, 32>}, {pipeline_mode = #tpu.pipeline_mode<synchronous>, transform_indices = @transform_1, window_bounds = array<i64: 32, 1280>}, {transform_indices = @transform_2, window_bounds = array<i64: 1, 1, 1280>}]} {
    %c0_i32 = arith.constant 0 : i32
    %0 = arith.cmpi eq, %arg2, %c0_i32 : i32
    %1 = arith.extui %0 : i1 to i32
    %c0_i32_0 = arith.constant 0 : i32
    %2 = arith.cmpi ne, %1, %c0_i32_0 : i32
    scf.if %2 {
      %cst_49 = arith.constant 0.000000e+00 : f32
      %78 = vector.broadcast %cst_49 : f32 to vector<8x1280xf32>
      %c0_50 = arith.constant 0 : index
      %c0_51 = arith.constant 0 : index
      %79 = vector.load %arg6[%c0_50, %c0_51] : memref<8x1280xf32, #tpu.memory_space<vmem>>, vector<8x1280xf32>
      tpu.vector_store %arg6[%c0_50, %c0_51], %78 {strides = array<i32>} : memref<8x1280xf32, #tpu.memory_space<vmem>>, vector<8x1280xf32>,
    } else {
    }
    %c0 = arith.constant 0 : index
    %c0_1 = arith.constant 0 : index
    %c0_2 = arith.constant 0 : index
    %3 = vector.load %arg3[%c0, %c0_1, %c0_2] : memref<1x32x32xbf16, #tpu.memory_space<vmem>>, vector<1x32x32xbf16>
    %4 = vector.shape_cast %3 : vector<1x32x32xbf16> to vector<32x32xbf16>
    %c0_3 = arith.constant 0 : index
    %c0_4 = arith.constant 0 : index
    %5 = vector.load %arg4[%c0_3, %c0_4] : memref<32x1280xbf16, #tpu.memory_space<vmem>>, vector<32x256xbf16>
    %cst = arith.constant dense<0.000000e+00> : vector<32x256xf32>
    %6 = tpu.matmul %4, %5, %cst {dimension_numbers = #tpu.dot_dimension_numbers<[1], [0], [0], [1], [0, 0, 1, 1], [], []>} : vector<32x32xbf16>, vector<32x256xbf16>, vector<32x256xf32> -> vector<32x256xf32>
    %cst_5 = arith.constant 0.000000e+00 : f32
    %7 = vector.broadcast %cst_5 : f32 to vector<32x256xf32>
    %8 = arith.subf %7, %6 : vector<32x256xf32>
    %9 = math.exp %8 : vector<32x256xf32>
    %cst_6 = arith.constant 1.000000e+00 : f32
    %10 = vector.broadcast %cst_6 : f32 to vector<32x256xf32>
    %11 = arith.addf %10, %9 : vector<32x256xf32>
    %12 = tpu.reciprocal %11 {approx = true} : vector<32x256xf32> -> vector<32x256xf32>
    %13 = arith.mulf %6, %12 : vector<32x256xf32>
    %c0_7 = arith.constant 0 : index
    %c0_8 = arith.constant 0 : index
    %14 = vector.load %arg6[%c0_7, %c0_8] : memref<8x1280xf32, #tpu.memory_space<vmem>>, vector<8x256xf32>
    %15 = vector.shape_cast %13 : vector<32x256xf32> to vector<4x8x256xf32>
    %cst_9 = arith.constant dense<0.000000e+00> : vector<8x256xf32>
    %16 = vector.multi_reduction <add>, %15, %cst_9 [0] : vector<4x8x256xf32> to vector<8x256xf32>
    %17 = arith.addf %14, %16 : vector<8x256xf32>
    %c0_10 = arith.constant 0 : index
    %c0_11 = arith.constant 0 : index
    %18 = vector.load %arg6[%c0_10, %c0_11] : memref<8x1280xf32, #tpu.memory_space<vmem>>, vector<8x256xf32>
    tpu.vector_store %arg6[%c0_10, %c0_11], %17 {strides = array<i32>} : memref<8x1280xf32, #tpu.memory_space<vmem>>, vector<8x256xf32>,
    %c0_12 = arith.constant 0 : index
    %c256 = arith.constant 256 : index
    %19 = vector.load %arg4[%c0_12, %c256] : memref<32x1280xbf16, #tpu.memory_space<vmem>>, vector<32x256xbf16>
    %cst_13 = arith.constant dense<0.000000e+00> : vector<32x256xf32>
    %20 = tpu.matmul %4, %19, %cst_13 {dimension_numbers = #tpu.dot_dimension_numbers<[1], [0], [0], [1], [0, 0, 1, 1], [], []>} : vector<32x32xbf16>, vector<32x256xbf16>, vector<32x256xf32> -> vector<32x256xf32>
    %cst_14 = arith.constant 0.000000e+00 : f32
    %21 = vector.broadcast %cst_14 : f32 to vector<32x256xf32>
    %22 = arith.subf %21, %20 : vector<32x256xf32>
    %23 = math.exp %22 : vector<32x256xf32>
    %cst_15 = arith.constant 1.000000e+00 : f32
    %24 = vector.broadcast %cst_15 : f32 to vector<32x256xf32>
    %25 = arith.addf %24, %23 : vector<32x256xf32>
    %26 = tpu.reciprocal %25 {approx = true} : vector<32x256xf32> -> vector<32x256xf32>
    %27 = arith.mulf %20, %26 : vector<32x256xf32>
    %c0_16 = arith.constant 0 : index
    %c256_17 = arith.constant 256 : index
    %28 = vector.load %arg6[%c0_16, %c256_17] : memref<8x1280xf32, #tpu.memory_space<vmem>>, vector<8x256xf32>
    %29 = vector.shape_cast %27 : vector<32x256xf32> to vector<4x8x256xf32>
    %cst_18 = arith.constant dense<0.000000e+00> : vector<8x256xf32>
    %30 = vector.multi_reduction <add>, %29, %cst_18 [0] : vector<4x8x256xf32> to vector<8x256xf32>
    %31 = arith.addf %28, %30 : vector<8x256xf32>
    %c0_19 = arith.constant 0 : index
    %c256_20 = arith.constant 256 : index
    %32 = vector.load %arg6[%c0_19, %c256_20] : memref<8x1280xf32, #tpu.memory_space<vmem>>, vector<8x256xf32>
    tpu.vector_store %arg6[%c0_19, %c256_20], %31 {strides = array<i32>} : memref<8x1280xf32, #tpu.memory_space<vmem>>, vector<8x256xf32>,
    %c0_21 = arith.constant 0 : index
    %c512 = arith.constant 512 : index
    %33 = vector.load %arg4[%c0_21, %c512] : memref<32x1280xbf16, #tpu.memory_space<vmem>>, vector<32x256xbf16>
    %cst_22 = arith.constant dense<0.000000e+00> : vector<32x256xf32>
    %34 = tpu.matmul %4, %33, %cst_22 {dimension_numbers = #tpu.dot_dimension_numbers<[1], [0], [0], [1], [0, 0, 1, 1], [], []>} : vector<32x32xbf16>, vector<32x256xbf16>, vector<32x256xf32> -> vector<32x256xf32>
    %cst_23 = arith.constant 0.000000e+00 : f32
    %35 = vector.broadcast %cst_23 : f32 to vector<32x256xf32>
    %36 = arith.subf %35, %34 : vector<32x256xf32>
    %37 = math.exp %36 : vector<32x256xf32>
    %cst_24 = arith.constant 1.000000e+00 : f32
    %38 = vector.broadcast %cst_24 : f32 to vector<32x256xf32>
    %39 = arith.addf %38, %37 : vector<32x256xf32>
    %40 = tpu.reciprocal %39 {approx = true} : vector<32x256xf32> -> vector<32x256xf32>
    %41 = arith.mulf %34, %40 : vector<32x256xf32>
    %c0_25 = arith.constant 0 : index
    %c512_26 = arith.constant 512 : index
    %42 = vector.load %arg6[%c0_25, %c512_26] : memref<8x1280xf32, #tpu.memory_space<vmem>>, vector<8x256xf32>
    %43 = vector.shape_cast %41 : vector<32x256xf32> to vector<4x8x256xf32>
    %cst_27 = arith.constant dense<0.000000e+00> : vector<8x256xf32>
    %44 = vector.multi_reduction <add>, %43, %cst_27 [0] : vector<4x8x256xf32> to vector<8x256xf32>
    %45 = arith.addf %42, %44 : vector<8x256xf32>
    %c0_28 = arith.constant 0 : index
    %c512_29 = arith.constant 512 : index
    %46 = vector.load %arg6[%c0_28, %c512_29] : memref<8x1280xf32, #tpu.memory_space<vmem>>, vector<8x256xf32>
    tpu.vector_store %arg6[%c0_28, %c512_29], %45 {strides = array<i32>} : memref<8x1280xf32, #tpu.memory_space<vmem>>, vector<8x256xf32>,
    %c0_30 = arith.constant 0 : index
    %c768 = arith.constant 768 : index
    %47 = vector.load %arg4[%c0_30, %c768] : memref<32x1280xbf16, #tpu.memory_space<vmem>>, vector<32x256xbf16>
    %cst_31 = arith.constant dense<0.000000e+00> : vector<32x256xf32>
    %48 = tpu.matmul %4, %47, %cst_31 {dimension_numbers = #tpu.dot_dimension_numbers<[1], [0], [0], [1], [0, 0, 1, 1], [], []>} : vector<32x32xbf16>, vector<32x256xbf16>, vector<32x256xf32> -> vector<32x256xf32>
    %cst_32 = arith.constant 0.000000e+00 : f32
    %49 = vector.broadcast %cst_32 : f32 to vector<32x256xf32>
    %50 = arith.subf %49, %48 : vector<32x256xf32>
    %51 = math.exp %50 : vector<32x256xf32>
    %cst_33 = arith.constant 1.000000e+00 : f32
    %52 = vector.broadcast %cst_33 : f32 to vector<32x256xf32>
    %53 = arith.addf %52, %51 : vector<32x256xf32>
    %54 = tpu.reciprocal %53 {approx = true} : vector<32x256xf32> -> vector<32x256xf32>
    %55 = arith.mulf %48, %54 : vector<32x256xf32>
    %c0_34 = arith.constant 0 : index
    %c768_35 = arith.constant 768 : index
    %56 = vector.load %arg6[%c0_34, %c768_35] : memref<8x1280xf32, #tpu.memory_space<vmem>>, vector<8x256xf32>
    %57 = vector.shape_cast %55 : vector<32x256xf32> to vector<4x8x256xf32>
    %cst_36 = arith.constant dense<0.000000e+00> : vector<8x256xf32>
    %58 = vector.multi_reduction <add>, %57, %cst_36 [0] : vector<4x8x256xf32> to vector<8x256xf32>
    %59 = arith.addf %56, %58 : vector<8x256xf32>
    %c0_37 = arith.constant 0 : index
    %c768_38 = arith.constant 768 : index
    %60 = vector.load %arg6[%c0_37, %c768_38] : memref<8x1280xf32, #tpu.memory_space<vmem>>, vector<8x256xf32>
    tpu.vector_store %arg6[%c0_37, %c768_38], %59 {strides = array<i32>} : memref<8x1280xf32, #tpu.memory_space<vmem>>, vector<8x256xf32>,
    %c0_39 = arith.constant 0 : index
    %c1024 = arith.constant 1024 : index
    %61 = vector.load %arg4[%c0_39, %c1024] : memref<32x1280xbf16, #tpu.memory_space<vmem>>, vector<32x256xbf16>
    %cst_40 = arith.constant dense<0.000000e+00> : vector<32x256xf32>
    %62 = tpu.matmul %4, %61, %cst_40 {dimension_numbers = #tpu.dot_dimension_numbers<[1], [0], [0], [1], [0, 0, 1, 1], [], []>} : vector<32x32xbf16>, vector<32x256xbf16>, vector<32x256xf32> -> vector<32x256xf32>
    %cst_41 = arith.constant 0.000000e+00 : f32
    %63 = vector.broadcast %cst_41 : f32 to vector<32x256xf32>
    %64 = arith.subf %63, %62 : vector<32x256xf32>
    %65 = math.exp %64 : vector<32x256xf32>
    %cst_42 = arith.constant 1.000000e+00 : f32
    %66 = vector.broadcast %cst_42 : f32 to vector<32x256xf32>
    %67 = arith.addf %66, %65 : vector<32x256xf32>
    %68 = tpu.reciprocal %67 {approx = true} : vector<32x256xf32> -> vector<32x256xf32>
    %69 = arith.mulf %62, %68 : vector<32x256xf32>
    %c0_43 = arith.constant 0 : index
    %c1024_44 = arith.constant 1024 : index
    %70 = vector.load %arg6[%c0_43, %c1024_44] : memref<8x1280xf32, #tpu.memory_space<vmem>>, vector<8x256xf32>
    %71 = vector.shape_cast %69 : vector<32x256xf32> to vector<4x8x256xf32>
    %cst_45 = arith.constant dense<0.000000e+00> : vector<8x256xf32>
    %72 = vector.multi_reduction <add>, %71, %cst_45 [0] : vector<4x8x256xf32> to vector<8x256xf32>
    %73 = arith.addf %70, %72 : vector<8x256xf32>
    %c0_46 = arith.constant 0 : index
    %c1024_47 = arith.constant 1024 : index
    %74 = vector.load %arg6[%c0_46, %c1024_47] : memref<8x1280xf32, #tpu.memory_space<vmem>>, vector<8x256xf32>
    tpu.vector_store %arg6[%c0_46, %c1024_47], %73 {strides = array<i32>} : memref<8x1280xf32, #tpu.memory_space<vmem>>, vector<8x256xf32>,
    %c2_i32 = arith.constant 2 : i32
    %75 = arith.cmpi eq, %arg2, %c2_i32 : i32
    %76 = arith.extui %75 : i1 to i32
    %c0_i32_48 = arith.constant 0 : i32
    %77 = arith.cmpi ne, %76, %c0_i32_48 : i32
    scf.if %77 {
      %c0_49 = arith.constant 0 : index
      %c0_50 = arith.constant 0 : index
      %78 = vector.load %arg6[%c0_49, %c0_50] : memref<8x1280xf32, #tpu.memory_space<vmem>>, vector<8x1280xf32>
      %cst_51 = arith.constant dense<0.000000e+00> : vector<1280xf32>
      %79 = vector.multi_reduction <add>, %78, %cst_51 [0] : vector<8x1280xf32> to vector<1280xf32>
      %80 = vector.shape_cast %79 : vector<1280xf32> to vector<1x1280xf32>
      %c0_52 = arith.constant 0 : index
      %c0_53 = arith.constant 0 : index
      %c0_54 = arith.constant 0 : index
      %81 = vector.load %arg5[%c0_52, %c0_53, %c0_54] : memref<1x1x1280xf32, #tpu.memory_space<vmem>>, vector<1x1x1280xf32>
      %82 = vector.shape_cast %81 : vector<1x1x1280xf32> to vector<1x1280xf32>
      %83 = vector.shape_cast %80 : vector<1x1280xf32> to vector<1x1x1280xf32>
      tpu.vector_store %arg5[%c0_52, %c0_53, %c0_54], %83 {strides = array<i32>} : memref<1x1x1280xf32, #tpu.memory_space<vmem>>, vector<1x1x1280xf32>,
    } else {
    }
    return
  }
  func.func @transform_0(%arg0: i32, %arg1: i32, %arg2: i32) -> (i32, i32, i32) {
    %c3_i32 = arith.constant 3 : i32
    %0 = arith.muli %arg0, %c3_i32 : i32
    %1 = arith.addi %0, %arg2 : i32
    %c0_i32 = arith.constant 0 : i32
    %c0_i32_0 = arith.constant 0 : i32
    return %arg1, %1, %c0_i32 : i32, i32, i32
  }
  func.func @transform_1(%arg0: i32, %arg1: i32, %arg2: i32) -> (i32, i32) {
    %c0_i32 = arith.constant 0 : i32
    %c0_i32_0 = arith.constant 0 : i32
    %c0_i32_1 = arith.constant 0 : i32
    return %c0_i32, %c0_i32_0 : i32, i32
  }
  func.func @transform_2(%arg0: i32, %arg1: i32, %arg2: i32) -> (i32, i32, i32) {
    %c2_i32 = arith.constant 2 : i32
    %0 = arith.muli %arg0, %c2_i32 : i32
    %1 = arith.addi %0, %arg1 : i32
    %c0_i32 = arith.constant 0 : i32
    %c0_i32_0 = arith.constant 0 : i32
    %c0_i32_1 = arith.constant 0 : i32
    return %1, %c0_i32, %c0_i32_0 : i32, i32, i32
  }
}

</mosaic_0001>

<llo_original>
// kernel: custom_cnn_forward.1
$region0: #{custom_cnn_forward.1}
  #allocation0 [shape = 'u32[]', space=smem, size = 0x4, offset = 0x4, fixed_abs, tag = 'smem constant byte address 0x4 - core index']
  #allocation1 [shape = 'u32[72,128]{1,0:T(1,128)}', space=vmem, size = 0x9000, scoped, tag = 'internal scratch']
  #allocation2 [shape = 'f32[8,1280]{1,0:T(8,128)}', space=vmem, size = 0xa000, scoped, tag = 'scratch operand']
  %s0 = inlined_call_operand.vmem [shape: bf16[2,96,32], index: 0, kind: input, shape index: {}]
  %s1 = inlined_call_operand.vmem [shape: bf16[32,1280], index: 1, kind: input, shape index: {}]
  %s2 = inlined_call_operand.vmem [shape: f32[2,1,1280], index: 2, kind: output, shape index: {}]
  %s3 = sld [smem:[#allocation0]]
  $region49: #{custom_cnn_forward.1} parent=0
    _
  %s5 = ssub.s32 1, %s3
  %s6 = scalar_select 0, %s5, %s3
  loop: start=0, step=1, limit=8
  $region2: #{custom_cnn_forward.1} parent=0 // loop_pre_header
    _
  $region3: #{custom_cnn_forward.1} parent=0 // loop_header
    %s8 = sphi 0, %s12
    %p9 = scmp.ge.s32.totalorder %s8, 8
    %s15 = sphi 0, %s34
    %s16 = sphi 0, %s30
    %s17 = sphi 0, %s26
    %s18 = sphi 0, %s15
    %s19 = sphi 0, %s16
    %s20 = sphi 0, %s17
    %s21 = sphi 0, %s18
    %s22 = sphi 0, %s19
    %s23 = sphi 0, %s20
    %s43 = sphi 0, %s45
    %s46 = sphi 0, %s43
    %s47 = sphi 0, %s46
    %s63 = sphi 0, %s47
    %s67 = sphi 0, %s67
    %s69 = sphi 0, %s67
    %s70 = sphi 0, %s69
    %s84 = sphi 0, %s70
    %s94 = sphi 0, %s96
    %s97 = sphi 0, %s94
    %s98 = sphi 0, %s97
    %s114 = sphi 0, %s98
  $region4: #{custom_cnn_forward.1} parent=0 // loop_header_branch
    %11 = sbr.rel (%p9) target = $region8
  $region5: #{custom_cnn_forward.1} parent=0 // loop_body
    %s13 = ssub.s32 %s8, 1
    %s14 = ssub.s32 %s8, 2
    %s24 = sadd.s32 1, %s17
    %p25 = scmp.ge.s32.totalorder %s24, 3
    %s26 = scalar_select %p25, 0, %s24
    %s27 = sadd.s32 1, %s16
    %s28 = scalar_select %p25, %s27, %s16
    %p29 = scmp.ge.s32.totalorder %s28, 2
    %s30 = scalar_select %p29, 0, %s28
    %s31 = sadd.s32 1, %s15
    %s32 = scalar_select %p29, %s31, %s15
    %p33 = scmp.ge.s32.totalorder %s32, 1
    %s34 = scalar_select %p33, 0, %s32
    %s35 = smul.u32 %s15, 3
    %s36 = sadd.s32 %s35, %s17
    %s37 = smul.u32 %s34, 3
    %s38 = sadd.s32 %s37, %s26
    %s39 = ssub.s32 %s16, %s30
    %s40 = ssub.s32 %s36, %s38
    %s41 = sor.u32 %s39, %s40
    %p42 = scmp.eq.s32.totalorder %s41, 0
    %s44 = sadd.s32 %s43, 1
    %s45 = scalar_select %p42, %s43, %s44
    %p48 = pneg %p42
    %p49 = scmp.eq.s32.totalorder %s8, 5
    %p50 = por %p48, %p49
    %p51 = scmp.ne.s32.totalorder %s43, %s46
    %p52 = scmp.eq.s32.totalorder %s8, 0
    %p53 = por %p51, %p52
    %p54 = scmp.ne.s32.totalorder %s43, %s46
    %p55 = scmp.eq.s32.totalorder %s13, 5
    %p56 = por %p54, %p55
    %p57 = scmp.ne.s32.totalorder %s46, %s47
    %p58 = scmp.eq.s32.totalorder %s13, 0
    %p59 = por %p57, %p58
    %p60 = scmp.ne.s32.totalorder %s46, %s47
    %p61 = scmp.eq.s32.totalorder %s14, 5
    %p62 = por %p60, %p61
    %p64 = scmp.ne.s32.totalorder %s47, %s63
    %p65 = scmp.eq.s32.totalorder %s14, 0
    %p66 = por %p64, %p65
    %s68 = sadd.s32 %s67, 1
    %p71 = scmp.eq.s32.totalorder %s8, 5
    %p72 = scmp.ne.s32.totalorder %s67, %s69
    %p73 = scmp.eq.s32.totalorder %s8, 0
    %p74 = por %p72, %p73
    %p75 = scmp.ne.s32.totalorder %s67, %s69
    %p76 = scmp.eq.s32.totalorder %s13, 5
    %p77 = por %p75, %p76
    %p78 = scmp.ne.s32.totalorder %s69, %s70
    %p79 = scmp.eq.s32.totalorder %s13, 0
    %p80 = por %p78, %p79
    %p81 = scmp.ne.s32.totalorder %s69, %s70
    %p82 = scmp.eq.s32.totalorder %s14, 5
    %p83 = por %p81, %p82
    %p85 = scmp.ne.s32.totalorder %s70, %s84
    %p86 = scmp.eq.s32.totalorder %s14, 0
    %p87 = por %p85, %p86
    %s88 = smul.u32 %s15, 2
    %s89 = sadd.s32 %s88, %s16
    %s90 = smul.u32 %s34, 2
    %s91 = sadd.s32 %s90, %s30
    %s92 = ssub.s32 %s89, %s91
    %p93 = scmp.eq.s32.totalorder %s92, 0
    %s95 = sadd.s32 %s94, 1
    %s96 = scalar_select %p93, %s94, %s95
    %p99 = pneg %p93
    %p100 = scmp.eq.s32.totalorder %s8, 5
    %p101 = por %p99, %p100
    %p102 = scmp.ne.s32.totalorder %s94, %s97
    %p103 = scmp.eq.s32.totalorder %s8, 0
    %p104 = por %p102, %p103
    %p105 = scmp.ne.s32.totalorder %s94, %s97
    %p106 = scmp.eq.s32.totalorder %s13, 5
    %p107 = por %p105, %p106
    %p108 = scmp.ne.s32.totalorder %s97, %s98
    %p109 = scmp.eq.s32.totalorder %s13, 0
    %p110 = por %p108, %p109
    %p111 = scmp.ne.s32.totalorder %s97, %s98
    %p112 = scmp.eq.s32.totalorder %s14, 5
    %p113 = por %p111, %p112
    %p115 = scmp.ne.s32.totalorder %s98, %s114
    %p116 = scmp.eq.s32.totalorder %s14, 0
    %p117 = por %p115, %p116
    %p118 = scmp.le.s32.totalorder 1, %s8
    %p119 = scmp.lt.s32.totalorder %s8, 7
    %p120 = pnand %p118, %p119
    %p121 = pneg %p120
    // Predicated region
    $region9: #{custom_cnn_forward.1} parent=5 // pred_check
      _
    $region10: #{custom_cnn_forward.1} parent=5 // pred_check_branch
      %123 = sbr.rel (%p120) target = $region12
    $region11: #{custom_cnn_forward.1} parent=5 // pred_region
      %s124 = ssub.s32 %s8, 1
      // Predicated region
      $region13: #{custom_cnn_forward.1} parent=11 // pred_check
        %p125 = pneg %p80
      $region14: #{custom_cnn_forward.1} parent=11 // pred_check_branch
        %127 = sbr.rel (%p125) target = $region16
      $region15: #{custom_cnn_forward.1} parent=11 // pred_region
        _
      $region16: #{custom_cnn_forward.1} parent=11 // pred_fallthru
        _
    $region12: #{custom_cnn_forward.1} parent=5 // pred_fallthru
      _
    %p128 = scmp.lt.s32.totalorder %s8, 6
    // Predicated region
    $region17: #{custom_cnn_forward.1} parent=5 // pred_check
      %p129 = pneg %p128
    $region18: #{custom_cnn_forward.1} parent=5 // pred_check_branch
      %131 = sbr.rel (%p129) target = $region20
    $region19: #{custom_cnn_forward.1} parent=5 // pred_region
      // Predicated region
      $region21: #{custom_cnn_forward.1} parent=19 // pred_check
        %p132 = pneg %p53
      $region22: #{custom_cnn_forward.1} parent=19 // pred_check_branch
        %134 = sbr.rel (%p132) target = $region24
      $region23: #{custom_cnn_forward.1} parent=19 // pred_region
        %s135 = smul.u32 %s15, 3
        %s136 = sadd.s32 %s135, %s17
        %s137 = smul.u32 4, %s136
        %p138 = scmp.lt.s32.totalorder %s16, 1
        %s139 = scalar_select %p138, %s16, 1
        %p140 = scmp.lt.s32.totalorder %s137, 11
        %s141 = scalar_select %p140, %s137, 11
        %s142 = smul.addr %s139, 12
        %s143 = sadd.s32 %s141, %s142
        %s144 = smul.addr %s143, 4
        %s145 = scalar_lea.vmem %s0, %s144
        %s146 = smul.u32 %s15, 3
        %s147 = sadd.s32 %s146, %s17
        %s148 = smul.u32 4, %s147
      $region24: #{custom_cnn_forward.1} parent=19 // pred_fallthru
        _
    $region20: #{custom_cnn_forward.1} parent=5 // pred_fallthru
      _
    %p149 = scmp.le.s32.totalorder 1, %s8
    %p150 = scmp.lt.s32.totalorder %s8, 7
    %p151 = pnand %p149, %p150
    %p152 = pneg %p151
    // Predicated region
    $region25: #{custom_cnn_forward.1} parent=5 // pred_check
      _
    $region26: #{custom_cnn_forward.1} parent=5 // pred_check_branch
      %154 = sbr.rel (%p151) target = $region28
    $region27: #{custom_cnn_forward.1} parent=5 // pred_region
      %s155 = ssub.s32 %s8, 1
      %s156 = smul.u32 %s18, 3
      %s157 = sadd.s32 %s156, %s20
      %s158 = smul.u32 4, %s157
      %p159 = scmp.lt.s32.totalorder %s19, 1
      %s160 = scalar_select %p159, %s19, 1
      %p161 = scmp.lt.s32.totalorder %s158, 11
      %s162 = scalar_select %p161, %s158, 11
      %s163 = smul.addr %s160, 12
      %s164 = sadd.s32 %s162, %s163
      %s165 = smul.addr %s164, 4
      %s166 = scalar_lea.vmem %s0, %s165
      %p167 = pneg %p59
      %p168 = pneg %p56
      %p169 = pneg %p80
      %p170 = pneg %p77
      %p171 = pneg %p110
      %p172 = pneg %p107
      %s173 = smul.u32 %s18, 2
      %s174 = sadd.s32 %s173, %s19
      %p175 = scmp.lt.s32.totalorder %s174, 1
      %s176 = scalar_select %p175, %s174, 1
      %s177 = smul.addr %s176, 10
      %s178 = scalar_lea.vmem %s2, %s177
      %s179 = smul.u32 %s18, 3
      %s180 = sadd.s32 %s179, %s20
      %s181 = smul.u32 4, %s180
      %p182 = scmp.lt.s32.totalorder %s19, 1
      %s183 = scalar_select %p182, %s19, 1
      %p184 = scmp.lt.s32.totalorder %s181, 11
      %s185 = scalar_select %p184, %s181, 11
      %s186 = smul.addr %s183, 12
      %s187 = sadd.s32 %s185, %s186
      %s188 = smul.addr %s187, 4
      %s189 = scalar_lea.vmem %s0, %s188
      %s190 = smul.u32 %s18, 3
      %s191 = sadd.s32 %s190, %s20
      %s192 = smul.u32 4, %s191
      %s193 = smul.u32 %s18, 2
      %s194 = sadd.s32 %s193, %s19
      %p195 = scmp.lt.s32.totalorder %s194, 1
      %s196 = scalar_select %p195, %s194, 1
      %s197 = smul.addr %s196, 10
      %s198 = scalar_lea.vmem %s2, %s197
      %s199 = smul.u32 %s18, 2
      %s200 = sadd.s32 %s199, %s19
      %p202 = scmp.eq.s32.totalorder %s20, 0
      // Predicated region
      $region29: #{custom_cnn_forward.1} parent=27 // pred_check
        %p203 = pneg %p202
      $region30: #{custom_cnn_forward.1} parent=27 // pred_check_branch
        %205 = sbr.rel (%p203) target = $region32
      $region31: #{custom_cnn_forward.1} parent=27 // pred_region
        %206 = vst [vmem:[#allocation2] sm:$0xff] 0.0
        %207 = vst [vmem:[#allocation2 + $0x8] sm:$0xff] 0.0
        %208 = vst [vmem:[#allocation2 + $0x10] sm:$0xff] 0.0
        %209 = vst [vmem:[#allocation2 + $0x18] sm:$0xff] 0.0
        %210 = vst [vmem:[#allocation2 + $0x20] sm:$0xff] 0.0
        %211 = vst [vmem:[#allocation2 + $0x28] sm:$0xff] 0.0
        %212 = vst [vmem:[#allocation2 + $0x30] sm:$0xff] 0.0
        %213 = vst [vmem:[#allocation2 + $0x38] sm:$0xff] 0.0
        %214 = vst [vmem:[#allocation2 + $0x40] sm:$0xff] 0.0
        %215 = vst [vmem:[#allocation2 + $0x48] sm:$0xff] 0.0
      $region32: #{custom_cnn_forward.1} parent=27 // pred_fallthru
        _
      %v216 = vld [vmem:[%s189] sm:$0xf]
      %v217 = vld [vmem:[%s189 + $0x4] sm:$0xf]
      %v218 = vld [vmem:[%s189 + $0x8] sm:$0xf]
      %v219 = vld [vmem:[%s189 + $0xc] sm:$0xf]
      %v220 = vld [vmem:[%s1] sm:$0xff]
      %v221 = vld [vmem:[%s1 + $0x28] sm:$0xff]
      %v222 = vld [vmem:[%s1 + $0x50] sm:$0xff]
      %v223 = vld [vmem:[%s1 + $0x78] sm:$0xff]
      %v228 = vunpack.c.l.b16 %v216
      %v229 = vunpack.c.l.b16 %v217
      %v230 = vunpack.c.l.b16 %v218
      %v231 = vunpack.c.l.b16 %v219
      %v232 = vpack.c.b16 %v229, %v228
      %v233 = vpack.c.b16 %v231, %v230
      %v238 = vunpack.c.l.b16 %v220
      %v239 = vunpack.c.h.b16 %v220
      %v240 = vunpack.c.l.b16 %v221
      %v241 = vunpack.c.h.b16 %v221
      %v242 = vunpack.c.l.b16 %v222
      %v243 = vunpack.c.h.b16 %v222
      %v244 = vunpack.c.l.b16 %v223
      %v245 = vunpack.c.h.b16 %v223
      %v246 = vpack.c.b16 %v240, %v238
      %v247 = vpack.c.b16 %v241, %v239
      %v248 = vpack.c.b16 %v244, %v242
      %v249 = vpack.c.b16 %v245, %v243
      %vm254 = vcmask 261120
      %v256 = vsel %vm254, %v232, 0
      %v259 = vsel %vm254, %v233, 0
      %261 = vmatpush.bf16.msra.mxu0 0
      %262 = vmatpush.bf16.msra.mxu0 0
      %263 = vmatpush.bf16.msra.mxu0 0
      %264 = vmatpush.bf16.msra.mxu0 0
      %265 = vmatpush.bf16.msra.mxu0 0
      %266 = vmatpush.bf16.msra.mxu0 0
      %267 = vmatpush.bf16.msra.mxu0 %v248
      %268 = vmatpush.bf16.msra.mxu0 %v246
      %269 = vmatmul.bf16.gmra.mxu0 %v256
      %v270 = vpop.f32.mrf.mxu0
      %v271 = vadd.f32 0.0, %v270
      %v272 = vpop.f32.mrf.mxu0
      %v273 = vadd.f32 0.0, %v272
      %274 = vmatmul.bf16.gmra.mxu0 %v259
      %v275 = vpop.f32.mrf.mxu0
      %v276 = vadd.f32 0.0, %v275
      %v277 = vpop.f32.mrf.mxu0
      %v278 = vadd.f32 0.0, %v277
      %279 = vdwg.mxu0
      %280 = vmatpush.bf16.msra.mxu0 0
      %281 = vmatpush.bf16.msra.mxu0 0
      %282 = vmatpush.bf16.msra.mxu0 0
      %283 = vmatpush.bf16.msra.mxu0 0
      %284 = vmatpush.bf16.msra.mxu0 0
      %285 = vmatpush.bf16.msra.mxu0 0
      %286 = vmatpush.bf16.msra.mxu0 %v249
      %287 = vmatpush.bf16.msra.mxu0 %v247
      %288 = vmatmul.bf16.gmra.mxu0 %v256
      %v289 = vpop.f32.mrf.mxu0
      %v290 = vadd.f32 0.0, %v289
      %v291 = vpop.f32.mrf.mxu0
      %v292 = vadd.f32 0.0, %v291
      %293 = vmatmul.bf16.gmra.mxu0 %v259
      %v294 = vpop.f32.mrf.mxu0
      %v295 = vadd.f32 0.0, %v294
      %v296 = vpop.f32.mrf.mxu0
      %v297 = vadd.f32 0.0, %v296
      %298 = vdwg.mxu0
      %v299 = vsub.f32 0.0, %v271
      %v300 = vsub.f32 0.0, %v290
      %v301 = vsub.f32 0.0, %v273
      %v302 = vsub.f32 0.0, %v292
      %v303 = vsub.f32 0.0, %v276
      %v304 = vsub.f32 0.0, %v295
      %v305 = vsub.f32 0.0, %v278
      %v306 = vsub.f32 0.0, %v297
      %v307 = vmul.f32 %v299, 1.442695
      %v308 = vpow.pop %v307
      %v309 = vmul.f32 %v300, 1.442695
      %v310 = vpow.pop %v309
      %v311 = vmul.f32 %v301, 1.442695
      %v312 = vpow.pop %v311
      %v313 = vmul.f32 %v302, 1.442695
      %v314 = vpow.pop %v313
      %v315 = vmul.f32 %v303, 1.442695
      %v316 = vpow.pop %v315
      %v317 = vmul.f32 %v304, 1.442695
      %v318 = vpow.pop %v317
      %v319 = vmul.f32 %v305, 1.442695
      %v320 = vpow.pop %v319
      %v321 = vmul.f32 %v306, 1.442695
      %v322 = vpow.pop %v321
      %v323 = vadd.f32 %v308, 1.0
      %v324 = vadd.f32 %v310, 1.0
      %v325 = vadd.f32 %v312, 1.0
      %v326 = vadd.f32 %v314, 1.0
      %v327 = vadd.f32 %v316, 1.0
      %v328 = vadd.f32 %v318, 1.0
      %v329 = vadd.f32 %v320, 1.0
      %v330 = vadd.f32 %v322, 1.0
      %v331 = vrcp.pop %v323
      %v332 = vrcp.pop %v324
      %v333 = vrcp.pop %v325
      %v334 = vrcp.pop %v326
      %v335 = vrcp.pop %v327
      %v336 = vrcp.pop %v328
      %v337 = vrcp.pop %v329
      %v338 = vrcp.pop %v330
      %v339 = vmul.f32 %v271, %v331
      %v340 = vmul.f32 %v290, %v332
      %v341 = vmul.f32 %v273, %v333
      %v342 = vmul.f32 %v292, %v334
      %v343 = vmul.f32 %v276, %v335
      %v344 = vmul.f32 %v295, %v336
      %v345 = vmul.f32 %v278, %v337
      %v346 = vmul.f32 %v297, %v338
      %v347 = vld [vmem:[#allocation2] sm:$0xff]
      %v348 = vld [vmem:[#allocation2 + $0x8] sm:$0xff]
      %v349 = vadd.f32 %v339, %v341
      %v350 = vadd.f32 %v349, %v343
      %v351 = vadd.f32 %v350, %v345
      %v352 = vadd.f32 %v340, %v342
      %v353 = vadd.f32 %v352, %v344
      %v354 = vadd.f32 %v353, %v346
      %v355 = vadd.f32 %v347, %v351
      %v356 = vadd.f32 %v348, %v354
      %357 = vst [vmem:[#allocation2] sm:$0xff] %v355
      %358 = vst [vmem:[#allocation2 + $0x8] sm:$0xff] %v356
      %v359 = vld [vmem:[%s1 + $0x8] sm:$0xff]
      %v360 = vld [vmem:[%s1 + $0x30] sm:$0xff]
      %v361 = vld [vmem:[%s1 + $0x58] sm:$0xff]
      %v362 = vld [vmem:[%s1 + $0x80] sm:$0xff]
      %v367 = vunpack.c.l.b16 %v359
      %v368 = vunpack.c.h.b16 %v359
      %v369 = vunpack.c.l.b16 %v360
      %v370 = vunpack.c.h.b16 %v360
      %v371 = vunpack.c.l.b16 %v361
      %v372 = vunpack.c.h.b16 %v361
      %v373 = vunpack.c.l.b16 %v362
      %v374 = vunpack.c.h.b16 %v362
      %v375 = vpack.c.b16 %v369, %v367
      %v376 = vpack.c.b16 %v370, %v368
      %v377 = vpack.c.b16 %v373, %v371
      %v378 = vpack.c.b16 %v374, %v372
      %383 = vmatpush.bf16.msra.mxu0 0
      %384 = vmatpush.bf16.msra.mxu0 0
      %385 = vmatpush.bf16.msra.mxu0 0
      %386 = vmatpush.bf16.msra.mxu0 0
      %387 = vmatpush.bf16.msra.mxu0 0
      %388 = vmatpush.bf16.msra.mxu0 0
      %389 = vmatpush.bf16.msra.mxu0 %v377
      %390 = vmatpush.bf16.msra.mxu0 %v375
      %391 = vmatmul.bf16.gmra.mxu0 %v256
      %v392 = vpop.f32.mrf.mxu0
      %v393 = vadd.f32 0.0, %v392
      %v394 = vpop.f32.mrf.mxu0
      %v395 = vadd.f32 0.0, %v394
      %396 = vmatmul.bf16.gmra.mxu0 %v259
      %v397 = vpop.f32.mrf.mxu0
      %v398 = vadd.f32 0.0, %v397
      %v399 = vpop.f32.mrf.mxu0
      %v400 = vadd.f32 0.0, %v399
      %401 = vdwg.mxu0
      %402 = vmatpush.bf16.msra.mxu0 0
      %403 = vmatpush.bf16.msra.mxu0 0
      %404 = vmatpush.bf16.msra.mxu0 0
      %405 = vmatpush.bf16.msra.mxu0 0
      %406 = vmatpush.bf16.msra.mxu0 0
      %407 = vmatpush.bf16.msra.mxu0 0
      %408 = vmatpush.bf16.msra.mxu0 %v378
      %409 = vmatpush.bf16.msra.mxu0 %v376
      %410 = vmatmul.bf16.gmra.mxu0 %v256
      %v411 = vpop.f32.mrf.mxu0
      %v412 = vadd.f32 0.0, %v411
      %v413 = vpop.f32.mrf.mxu0
      %v414 = vadd.f32 0.0, %v413
      %415 = vmatmul.bf16.gmra.mxu0 %v259
      %v416 = vpop.f32.mrf.mxu0
      %v417 = vadd.f32 0.0, %v416
      %v418 = vpop.f32.mrf.mxu0
      %v419 = vadd.f32 0.0, %v418
      %420 = vdwg.mxu0
      %v421 = vsub.f32 0.0, %v393
      %v422 = vsub.f32 0.0, %v412
      %v423 = vsub.f32 0.0, %v395
      %v424 = vsub.f32 0.0, %v414
      %v425 = vsub.f32 0.0, %v398
      %v426 = vsub.f32 0.0, %v417
      %v427 = vsub.f32 0.0, %v400
      %v428 = vsub.f32 0.0, %v419
      %v429 = vmul.f32 %v421, 1.442695
      %v430 = vpow.pop %v429
      %v431 = vmul.f32 %v422, 1.442695
      %v432 = vpow.pop %v431
      %v433 = vmul.f32 %v423, 1.442695
      %v434 = vpow.pop %v433
      %v435 = vmul.f32 %v424, 1.442695
      %v436 = vpow.pop %v435
      %v437 = vmul.f32 %v425, 1.442695
      %v438 = vpow.pop %v437
      %v439 = vmul.f32 %v426, 1.442695
      %v440 = vpow.pop %v439
      %v441 = vmul.f32 %v427, 1.442695
      %v442 = vpow.pop %v441
      %v443 = vmul.f32 %v428, 1.442695
      %v444 = vpow.pop %v443
      %v445 = vadd.f32 %v430, 1.0
      %v446 = vadd.f32 %v432, 1.0
      %v447 = vadd.f32 %v434, 1.0
      %v448 = vadd.f32 %v436, 1.0
      %v449 = vadd.f32 %v438, 1.0
      %v450 = vadd.f32 %v440, 1.0
      %v451 = vadd.f32 %v442, 1.0
      %v452 = vadd.f32 %v444, 1.0
      %v453 = vrcp.pop %v445
      %v454 = vrcp.pop %v446
      %v455 = vrcp.pop %v447
      %v456 = vrcp.pop %v448
      %v457 = vrcp.pop %v449
      %v458 = vrcp.pop %v450
      %v459 = vrcp.pop %v451
      %v460 = vrcp.pop %v452
      %v461 = vmul.f32 %v393, %v453
      %v462 = vmul.f32 %v412, %v454
      %v463 = vmul.f32 %v395, %v455
      %v464 = vmul.f32 %v414, %v456
      %v465 = vmul.f32 %v398, %v457
      %v466 = vmul.f32 %v417, %v458
      %v467 = vmul.f32 %v400, %v459
      %v468 = vmul.f32 %v419, %v460
      %v469 = vld [vmem:[#allocation2 + $0x10] sm:$0xff]
      %v470 = vld [vmem:[#allocation2 + $0x18] sm:$0xff]
      %v471 = vadd.f32 %v461, %v463
      %v472 = vadd.f32 %v471, %v465
      %v473 = vadd.f32 %v472, %v467
      %v474 = vadd.f32 %v462, %v464
      %v475 = vadd.f32 %v474, %v466
      %v476 = vadd.f32 %v475, %v468
      %v477 = vadd.f32 %v469, %v473
      %v478 = vadd.f32 %v470, %v476
      %479 = vst [vmem:[#allocation2 + $0x10] sm:$0xff] %v477
      %480 = vst [vmem:[#allocation2 + $0x18] sm:$0xff] %v478
      %v481 = vld [vmem:[%s1 + $0x10] sm:$0xff]
      %v482 = vld [vmem:[%s1 + $0x38] sm:$0xff]
      %v483 = vld [vmem:[%s1 + $0x60] sm:$0xff]
      %v484 = vld [vmem:[%s1 + $0x88] sm:$0xff]
      %v489 = vunpack.c.l.b16 %v481
      %v490 = vunpack.c.h.b16 %v481
      %v491 = vunpack.c.l.b16 %v482
      %v492 = vunpack.c.h.b16 %v482
      %v493 = vunpack.c.l.b16 %v483
      %v494 = vunpack.c.h.b16 %v483
      %v495 = vunpack.c.l.b16 %v484
      %v496 = vunpack.c.h.b16 %v484
      %v497 = vpack.c.b16 %v491, %v489
      %v498 = vpack.c.b16 %v492, %v490
      %v499 = vpack.c.b16 %v495, %v493
      %v500 = vpack.c.b16 %v496, %v494
      %505 = vmatpush.bf16.msra.mxu0 0
      %506 = vmatpush.bf16.msra.mxu0 0
      %507 = vmatpush.bf16.msra.mxu0 0
      %508 = vmatpush.bf16.msra.mxu0 0
      %509 = vmatpush.bf16.msra.mxu0 0
      %510 = vmatpush.bf16.msra.mxu0 0
      %511 = vmatpush.bf16.msra.mxu0 %v499
      %512 = vmatpush.bf16.msra.mxu0 %v497
      %513 = vmatmul.bf16.gmra.mxu0 %v256
      %v514 = vpop.f32.mrf.mxu0
      %v515 = vadd.f32 0.0, %v514
      %v516 = vpop.f32.mrf.mxu0
      %v517 = vadd.f32 0.0, %v516
      %518 = vmatmul.bf16.gmra.mxu0 %v259
      %v519 = vpop.f32.mrf.mxu0
      %v520 = vadd.f32 0.0, %v519
      %v521 = vpop.f32.mrf.mxu0
      %v522 = vadd.f32 0.0, %v521
      %523 = vdwg.mxu0
      %524 = vmatpush.bf16.msra.mxu0 0
      %525 = vmatpush.bf16.msra.mxu0 0
      %526 = vmatpush.bf16.msra.mxu0 0
      %527 = vmatpush.bf16.msra.mxu0 0
      %528 = vmatpush.bf16.msra.mxu0 0
      %529 = vmatpush.bf16.msra.mxu0 0
      %530 = vmatpush.bf16.msra.mxu0 %v500
      %531 = vmatpush.bf16.msra.mxu0 %v498
      %532 = vmatmul.bf16.gmra.mxu0 %v256
      %v533 = vpop.f32.mrf.mxu0
      %v534 = vadd.f32 0.0, %v533
      %v535 = vpop.f32.mrf.mxu0
      %v536 = vadd.f32 0.0, %v535
      %537 = vmatmul.bf16.gmra.mxu0 %v259
      %v538 = vpop.f32.mrf.mxu0
      %v539 = vadd.f32 0.0, %v538
      %v540 = vpop.f32.mrf.mxu0
      %v541 = vadd.f32 0.0, %v540
      %542 = vdwg.mxu0
      %v543 = vsub.f32 0.0, %v515
      %v544 = vsub.f32 0.0, %v534
      %v545 = vsub.f32 0.0, %v517
      %v546 = vsub.f32 0.0, %v536
      %v547 = vsub.f32 0.0, %v520
      %v548 = vsub.f32 0.0, %v539
      %v549 = vsub.f32 0.0, %v522
      %v550 = vsub.f32 0.0, %v541
      %v551 = vmul.f32 %v543, 1.442695
      %v552 = vpow.pop %v551
      %v553 = vmul.f32 %v544, 1.442695
      %v554 = vpow.pop %v553
      %v555 = vmul.f32 %v545, 1.442695
      %v556 = vpow.pop %v555
      %v557 = vmul.f32 %v546, 1.442695
      %v558 = vpow.pop %v557
      %v559 = vmul.f32 %v547, 1.442695
      %v560 = vpow.pop %v559
      %v561 = vmul.f32 %v548, 1.442695
      %v562 = vpow.pop %v561
      %v563 = vmul.f32 %v549, 1.442695
      %v564 = vpow.pop %v563
      %v565 = vmul.f32 %v550, 1.442695
      %v566 = vpow.pop %v565
      %v567 = vadd.f32 %v552, 1.0
      %v568 = vadd.f32 %v554, 1.0
      %v569 = vadd.f32 %v556, 1.0
      %v570 = vadd.f32 %v558, 1.0
      %v571 = vadd.f32 %v560, 1.0
      %v572 = vadd.f32 %v562, 1.0
      %v573 = vadd.f32 %v564, 1.0
      %v574 = vadd.f32 %v566, 1.0
      %v575 = vrcp.pop %v567
      %v576 = vrcp.pop %v568
      %v577 = vrcp.pop %v569
      %v578 = vrcp.pop %v570
      %v579 = vrcp.pop %v571
      %v580 = vrcp.pop %v572
      %v581 = vrcp.pop %v573
      %v582 = vrcp.pop %v574
      %v583 = vmul.f32 %v515, %v575
      %v584 = vmul.f32 %v534, %v576
      %v585 = vmul.f32 %v517, %v577
      %v586 = vmul.f32 %v536, %v578
      %v587 = vmul.f32 %v520, %v579
      %v588 = vmul.f32 %v539, %v580
      %v589 = vmul.f32 %v522, %v581
      %v590 = vmul.f32 %v541, %v582
      %v591 = vld [vmem:[#allocation2 + $0x20] sm:$0xff]
      %v592 = vld [vmem:[#allocation2 + $0x28] sm:$0xff]
      %v593 = vadd.f32 %v583, %v585
      %v594 = vadd.f32 %v593, %v587
      %v595 = vadd.f32 %v594, %v589
      %v596 = vadd.f32 %v584, %v586
      %v597 = vadd.f32 %v596, %v588
      %v598 = vadd.f32 %v597, %v590
      %v599 = vadd.f32 %v591, %v595
      %v600 = vadd.f32 %v592, %v598
      %601 = vst [vmem:[#allocation2 + $0x20] sm:$0xff] %v599
      %602 = vst [vmem:[#allocation2 + $0x28] sm:$0xff] %v600
      %v603 = vld [vmem:[%s1 + $0x18] sm:$0xff]
      %v604 = vld [vmem:[%s1 + $0x40] sm:$0xff]
      %v605 = vld [vmem:[%s1 + $0x68] sm:$0xff]
      %v606 = vld [vmem:[%s1 + $0x90] sm:$0xff]
      %v611 = vunpack.c.l.b16 %v603
      %v612 = vunpack.c.h.b16 %v603
      %v613 = vunpack.c.l.b16 %v604
      %v614 = vunpack.c.h.b16 %v604
      %v615 = vunpack.c.l.b16 %v605
      %v616 = vunpack.c.h.b16 %v605
      %v617 = vunpack.c.l.b16 %v606
      %v618 = vunpack.c.h.b16 %v606
      %v619 = vpack.c.b16 %v613, %v611
      %v620 = vpack.c.b16 %v614, %v612
      %v621 = vpack.c.b16 %v617, %v615
      %v622 = vpack.c.b16 %v618, %v616
      %627 = vmatpush.bf16.msra.mxu0 0
      %628 = vmatpush.bf16.msra.mxu0 0
      %629 = vmatpush.bf16.msra.mxu0 0
      %630 = vmatpush.bf16.msra.mxu0 0
      %631 = vmatpush.bf16.msra.mxu0 0
      %632 = vmatpush.bf16.msra.mxu0 0
      %633 = vmatpush.bf16.msra.mxu0 %v621
      %634 = vmatpush.bf16.msra.mxu0 %v619
      %635 = vmatmul.bf16.gmra.mxu0 %v256
      %v636 = vpop.f32.mrf.mxu0
      %v637 = vadd.f32 0.0, %v636
      %v638 = vpop.f32.mrf.mxu0
      %v639 = vadd.f32 0.0, %v638
      %640 = vmatmul.bf16.gmra.mxu0 %v259
      %v641 = vpop.f32.mrf.mxu0
      %v642 = vadd.f32 0.0, %v641
      %v643 = vpop.f32.mrf.mxu0
      %v644 = vadd.f32 0.0, %v643
      %645 = vdwg.mxu0
      %646 = vmatpush.bf16.msra.mxu0 0
      %647 = vmatpush.bf16.msra.mxu0 0
      %648 = vmatpush.bf16.msra.mxu0 0
      %649 = vmatpush.bf16.msra.mxu0 0
      %650 = vmatpush.bf16.msra.mxu0 0
      %651 = vmatpush.bf16.msra.mxu0 0
      %652 = vmatpush.bf16.msra.mxu0 %v622
      %653 = vmatpush.bf16.msra.mxu0 %v620
      %654 = vmatmul.bf16.gmra.mxu0 %v256
      %v655 = vpop.f32.mrf.mxu0
      %v656 = vadd.f32 0.0, %v655
      %v657 = vpop.f32.mrf.mxu0
      %v658 = vadd.f32 0.0, %v657
      %659 = vmatmul.bf16.gmra.mxu0 %v259
      %v660 = vpop.f32.mrf.mxu0
      %v661 = vadd.f32 0.0, %v660
      %v662 = vpop.f32.mrf.mxu0
      %v663 = vadd.f32 0.0, %v662
      %664 = vdwg.mxu0
      %v665 = vsub.f32 0.0, %v637
      %v666 = vsub.f32 0.0, %v656
      %v667 = vsub.f32 0.0, %v639
      %v668 = vsub.f32 0.0, %v658
      %v669 = vsub.f32 0.0, %v642
      %v670 = vsub.f32 0.0, %v661
      %v671 = vsub.f32 0.0, %v644
      %v672 = vsub.f32 0.0, %v663
      %v673 = vmul.f32 %v665, 1.442695
      %v674 = vpow.pop %v673
      %v675 = vmul.f32 %v666, 1.442695
      %v676 = vpow.pop %v675
      %v677 = vmul.f32 %v667, 1.442695
      %v678 = vpow.pop %v677
      %v679 = vmul.f32 %v668, 1.442695
      %v680 = vpow.pop %v679
      %v681 = vmul.f32 %v669, 1.442695
      %v682 = vpow.pop %v681
      %v683 = vmul.f32 %v670, 1.442695
      %v684 = vpow.pop %v683
      %v685 = vmul.f32 %v671, 1.442695
      %v686 = vpow.pop %v685
      %v687 = vmul.f32 %v672, 1.442695
      %v688 = vpow.pop %v687
      %v689 = vadd.f32 %v674, 1.0
      %v690 = vadd.f32 %v676, 1.0
      %v691 = vadd.f32 %v678, 1.0
      %v692 = vadd.f32 %v680, 1.0
      %v693 = vadd.f32 %v682, 1.0
      %v694 = vadd.f32 %v684, 1.0
      %v695 = vadd.f32 %v686, 1.0
      %v696 = vadd.f32 %v688, 1.0
      %v697 = vrcp.pop %v689
      %v698 = vrcp.pop %v690
      %v699 = vrcp.pop %v691
      %v700 = vrcp.pop %v692
      %v701 = vrcp.pop %v693
      %v702 = vrcp.pop %v694
      %v703 = vrcp.pop %v695
      %v704 = vrcp.pop %v696
      %v705 = vmul.f32 %v637, %v697
      %v706 = vmul.f32 %v656, %v698
      %v707 = vmul.f32 %v639, %v699
      %v708 = vmul.f32 %v658, %v700
      %v709 = vmul.f32 %v642, %v701
      %v710 = vmul.f32 %v661, %v702
      %v711 = vmul.f32 %v644, %v703
      %v712 = vmul.f32 %v663, %v704
      %v713 = vld [vmem:[#allocation2 + $0x30] sm:$0xff]
      %v714 = vld [vmem:[#allocation2 + $0x38] sm:$0xff]
      %v715 = vadd.f32 %v705, %v707
      %v716 = vadd.f32 %v715, %v709
      %v717 = vadd.f32 %v716, %v711
      %v718 = vadd.f32 %v706, %v708
      %v719 = vadd.f32 %v718, %v710
      %v720 = vadd.f32 %v719, %v712
      %v721 = vadd.f32 %v713, %v717
      %v722 = vadd.f32 %v714, %v720
      %723 = vst [vmem:[#allocation2 + $0x30] sm:$0xff] %v721
      %724 = vst [vmem:[#allocation2 + $0x38] sm:$0xff] %v722
      %v725 = vld [vmem:[%s1 + $0x20] sm:$0xff]
      %v726 = vld [vmem:[%s1 + $0x48] sm:$0xff]
      %v727 = vld [vmem:[%s1 + $0x70] sm:$0xff]
      %v728 = vld [vmem:[%s1 + $0x98] sm:$0xff]
      %v733 = vunpack.c.l.b16 %v725
      %v734 = vunpack.c.h.b16 %v725
      %v735 = vunpack.c.l.b16 %v726
      %v736 = vunpack.c.h.b16 %v726
      %v737 = vunpack.c.l.b16 %v727
      %v738 = vunpack.c.h.b16 %v727
      %v739 = vunpack.c.l.b16 %v728
      %v740 = vunpack.c.h.b16 %v728
      %v741 = vpack.c.b16 %v735, %v733
      %v742 = vpack.c.b16 %v736, %v734
      %v743 = vpack.c.b16 %v739, %v737
      %v744 = vpack.c.b16 %v740, %v738
      %749 = vmatpush.bf16.msra.mxu0 0
      %750 = vmatpush.bf16.msra.mxu0 0
      %751 = vmatpush.bf16.msra.mxu0 0
      %752 = vmatpush.bf16.msra.mxu0 0
      %753 = vmatpush.bf16.msra.mxu0 0
      %754 = vmatpush.bf16.msra.mxu0 0
      %755 = vmatpush.bf16.msra.mxu0 %v743
      %756 = vmatpush.bf16.msra.mxu0 %v741
      %757 = vmatmul.bf16.gmra.mxu0 %v256
      %v758 = vpop.f32.mrf.mxu0
      %v759 = vadd.f32 0.0, %v758
      %v760 = vpop.f32.mrf.mxu0
      %v761 = vadd.f32 0.0, %v760
      %762 = vmatmul.bf16.gmra.mxu0 %v259
      %v763 = vpop.f32.mrf.mxu0
      %v764 = vadd.f32 0.0, %v763
      %v765 = vpop.f32.mrf.mxu0
      %v766 = vadd.f32 0.0, %v765
      %767 = vdwg.mxu0
      %768 = vmatpush.bf16.msra.mxu0 0
      %769 = vmatpush.bf16.msra.mxu0 0
      %770 = vmatpush.bf16.msra.mxu0 0
      %771 = vmatpush.bf16.msra.mxu0 0
      %772 = vmatpush.bf16.msra.mxu0 0
      %773 = vmatpush.bf16.msra.mxu0 0
      %774 = vmatpush.bf16.msra.mxu0 %v744
      %775 = vmatpush.bf16.msra.mxu0 %v742
      %776 = vmatmul.bf16.gmra.mxu0 %v256
      %v777 = vpop.f32.mrf.mxu0
      %v778 = vadd.f32 0.0, %v777
      %v779 = vpop.f32.mrf.mxu0
      %v780 = vadd.f32 0.0, %v779
      %781 = vmatmul.bf16.gmra.mxu0 %v259
      %v782 = vpop.f32.mrf.mxu0
      %v783 = vadd.f32 0.0, %v782
      %v784 = vpop.f32.mrf.mxu0
      %v785 = vadd.f32 0.0, %v784
      %786 = vdwg.mxu0
      %v787 = vsub.f32 0.0, %v759
      %v788 = vsub.f32 0.0, %v778
      %v789 = vsub.f32 0.0, %v761
      %v790 = vsub.f32 0.0, %v780
      %v791 = vsub.f32 0.0, %v764
      %v792 = vsub.f32 0.0, %v783
      %v793 = vsub.f32 0.0, %v766
      %v794 = vsub.f32 0.0, %v785
      %v795 = vmul.f32 %v787, 1.442695
      %v796 = vpow.pop %v795
      %v797 = vmul.f32 %v788, 1.442695
      %v798 = vpow.pop %v797
      %v799 = vmul.f32 %v789, 1.442695
      %v800 = vpow.pop %v799
      %v801 = vmul.f32 %v790, 1.442695
      %v802 = vpow.pop %v801
      %v803 = vmul.f32 %v791, 1.442695
      %v804 = vpow.pop %v803
      %v805 = vmul.f32 %v792, 1.442695
      %v806 = vpow.pop %v805
      %v807 = vmul.f32 %v793, 1.442695
      %v808 = vpow.pop %v807
      %v809 = vmul.f32 %v794, 1.442695
      %v810 = vpow.pop %v809
      %v811 = vadd.f32 %v796, 1.0
      %v812 = vadd.f32 %v798, 1.0
      %v813 = vadd.f32 %v800, 1.0
      %v814 = vadd.f32 %v802, 1.0
      %v815 = vadd.f32 %v804, 1.0
      %v816 = vadd.f32 %v806, 1.0
      %v817 = vadd.f32 %v808, 1.0
      %v818 = vadd.f32 %v810, 1.0
      %v819 = vrcp.pop %v811
      %v820 = vrcp.pop %v812
      %v821 = vrcp.pop %v813
      %v822 = vrcp.pop %v814
      %v823 = vrcp.pop %v815
      %v824 = vrcp.pop %v816
      %v825 = vrcp.pop %v817
      %v826 = vrcp.pop %v818
      %v827 = vmul.f32 %v759, %v819
      %v828 = vmul.f32 %v778, %v820
      %v829 = vmul.f32 %v761, %v821
      %v830 = vmul.f32 %v780, %v822
      %v831 = vmul.f32 %v764, %v823
      %v832 = vmul.f32 %v783, %v824
      %v833 = vmul.f32 %v766, %v825
      %v834 = vmul.f32 %v785, %v826
      %v835 = vld [vmem:[#allocation2 + $0x40] sm:$0xff]
      %v836 = vld [vmem:[#allocation2 + $0x48] sm:$0xff]
      %v837 = vadd.f32 %v827, %v829
      %v838 = vadd.f32 %v837, %v831
      %v839 = vadd.f32 %v838, %v833
      %v840 = vadd.f32 %v828, %v830
      %v841 = vadd.f32 %v840, %v832
      %v842 = vadd.f32 %v841, %v834
      %v843 = vadd.f32 %v835, %v839
      %v844 = vadd.f32 %v836, %v842
      %845 = vst [vmem:[#allocation2 + $0x40] sm:$0xff] %v843
      %846 = vst [vmem:[#allocation2 + $0x48] sm:$0xff] %v844
      %p847 = scmp.eq.s32.totalorder %s20, 2
      // Predicated region
      $region33: #{custom_cnn_forward.1} parent=27 // pred_check
        %p848 = pneg %p847
      $region34: #{custom_cnn_forward.1} parent=27 // pred_check_branch
        %850 = sbr.rel (%p848) target = $region36
      $region35: #{custom_cnn_forward.1} parent=27 // pred_region
        %v851 = vld [vmem:[#allocation2] sm:$0xff]
        %v852 = vld [vmem:[#allocation2 + $0x8] sm:$0xff]
        %v853 = vld [vmem:[#allocation2 + $0x10] sm:$0xff]
        %v854 = vld [vmem:[#allocation2 + $0x18] sm:$0xff]
        %v855 = vld [vmem:[#allocation2 + $0x20] sm:$0xff]
        %v856 = vld [vmem:[#allocation2 + $0x28] sm:$0xff]
        %v857 = vld [vmem:[#allocation2 + $0x30] sm:$0xff]
        %v858 = vld [vmem:[#allocation2 + $0x38] sm:$0xff]
        %v859 = vld [vmem:[#allocation2 + $0x40] sm:$0xff]
        %v860 = vld [vmem:[#allocation2 + $0x48] sm:$0xff]
        %v861 = vrot.slane %v851, 4
        %v862 = vadd.f32 %v851, %v861
        %v863 = vrot.slane %v862, 2
        %v864 = vadd.f32 %v862, %v863
        %v865 = vrot.slane %v864, 1
        %v866 = vadd.f32 %v864, %v865
        %v867 = vrot.slane %v852, 4
        %v868 = vadd.f32 %v852, %v867
        %v869 = vrot.slane %v868, 2
        %v870 = vadd.f32 %v868, %v869
        %v871 = vrot.slane %v870, 1
        %v872 = vadd.f32 %v870, %v871
        %v873 = vrot.slane %v853, 4
        %v874 = vadd.f32 %v853, %v873
        %v875 = vrot.slane %v874, 2
        %v876 = vadd.f32 %v874, %v875
        %v877 = vrot.slane %v876, 1
        %v878 = vadd.f32 %v876, %v877
        %v879 = vrot.slane %v854, 4
        %v880 = vadd.f32 %v854, %v879
        %v881 = vrot.slane %v880, 2
        %v882 = vadd.f32 %v880, %v881
        %v883 = vrot.slane %v882, 1
        %v884 = vadd.f32 %v882, %v883
        %v885 = vrot.slane %v855, 4
        %v886 = vadd.f32 %v855, %v885
        %v887 = vrot.slane %v886, 2
        %v888 = vadd.f32 %v886, %v887
        %v889 = vrot.slane %v888, 1
        %v890 = vadd.f32 %v888, %v889
        %v891 = vrot.slane %v856, 4
        %v892 = vadd.f32 %v856, %v891
        %v893 = vrot.slane %v892, 2
        %v894 = vadd.f32 %v892, %v893
        %v895 = vrot.slane %v894, 1
        %v896 = vadd.f32 %v894, %v895
        %v897 = vrot.slane %v857, 4
        %v898 = vadd.f32 %v857, %v897
        %v899 = vrot.slane %v898, 2
        %v900 = vadd.f32 %v898, %v899
        %v901 = vrot.slane %v900, 1
        %v902 = vadd.f32 %v900, %v901
        %v903 = vrot.slane %v858, 4
        %v904 = vadd.f32 %v858, %v903
        %v905 = vrot.slane %v904, 2
        %v906 = vadd.f32 %v904, %v905
        %v907 = vrot.slane %v906, 1
        %v908 = vadd.f32 %v906, %v907
        %v909 = vrot.slane %v859, 4
        %v910 = vadd.f32 %v859, %v909
        %v911 = vrot.slane %v910, 2
        %v912 = vadd.f32 %v910, %v911
        %v913 = vrot.slane %v912, 1
        %v914 = vadd.f32 %v912, %v913
        %v915 = vrot.slane %v860, 4
        %v916 = vadd.f32 %v860, %v915
        %v917 = vrot.slane %v916, 2
        %v918 = vadd.f32 %v916, %v917
        %v919 = vrot.slane %v918, 1
        %v920 = vadd.f32 %v918, %v919
        %v931 = vrot.slane %v872, 7
        %v932 = vrot.slane %v878, 6
        %v933 = vrot.slane %v884, 5
        %v934 = vrot.slane %v890, 4
        %v935 = vrot.slane %v896, 3
        %v936 = vrot.slane %v902, 2
        %v937 = vrot.slane %v908, 1
        %v938 = vrot.slane %v920, 7
        %vm939 = vcmask 1040384
        %v940 = vsel %vm939, %v866, %v931
        %vm941 = vcmask 1042434
        %v942 = vsel %vm941, %v932, %v933
        %vm943 = vcmask 1041408
        %v944 = vsel %vm943, %v940, %v942
        %vm945 = vcmask 1044484
        %v946 = vsel %vm945, %v934, %v935
        %vm947 = vcmask 1046534
        %v948 = vsel %vm947, %v936, %v937
        %vm949 = vcmask 1045508
        %v950 = vsel %vm949, %v946, %v948
        %vm951 = vcmask 1043456
        %v952 = vsel %vm951, %v944, %v950
        %v953 = vsel %vm939, %v914, %v938
        %956 = vst [vmem:[%s198] sm:$0xff] %v952
        %v957 = vlaneseq
        %vm958 = vcmp.ge.s32.totalorder %v957, 0
        %vm959 = vcmp.lt.s32.totalorder %v957, 256
        %vm960 = vmand %vm958, %vm959
        %961 = vst.msk [vmem:[%s198 + $0x8] sm:$0x3] %vm960, %v953
      $region36: #{custom_cnn_forward.1} parent=27 // pred_fallthru
        _
      %s962 = smul.u32 %s18, 2
      %s963 = sadd.s32 %s962, %s19
      %p964 = scmp.lt.s32.totalorder %s963, 1
      %s965 = scalar_select %p964, %s963, 1
      %s966 = smul.addr %s965, 10
      %s967 = scalar_lea.vmem %s2, %s966
      // Predicated region
      $region37: #{custom_cnn_forward.1} parent=27 // pred_check
        %p968 = pneg %p107
      $region38: #{custom_cnn_forward.1} parent=27 // pred_check_branch
        %970 = sbr.rel (%p968) target = $region40
      $region39: #{custom_cnn_forward.1} parent=27 // pred_region
        %s971 = smul.u32 %s18, 2
        %s972 = sadd.s32 %s971, %s19
      $region40: #{custom_cnn_forward.1} parent=27 // pred_fallthru
        _
    $region28: #{custom_cnn_forward.1} parent=5 // pred_fallthru
      _
    %p973 = scmp.le.s32.totalorder 2, %s8
    // Predicated region
    $region41: #{custom_cnn_forward.1} parent=5 // pred_check
      %p974 = pneg %p973
    $region42: #{custom_cnn_forward.1} parent=5 // pred_check_branch
      %976 = sbr.rel (%p974) target = $region44
    $region43: #{custom_cnn_forward.1} parent=5 // pred_region
      %s977 = ssub.s32 %s8, 2
      // Predicated region
      $region45: #{custom_cnn_forward.1} parent=43 // pred_check
        %p978 = pneg %p113
      $region46: #{custom_cnn_forward.1} parent=43 // pred_check_branch
        %980 = sbr.rel (%p978) target = $region48
      $region47: #{custom_cnn_forward.1} parent=43 // pred_region
        %s981 = smul.u32 %s21, 2
        %s982 = sadd.s32 %s981, %s22
        %p983 = scmp.lt.s32.totalorder %s982, 1
        %s984 = scalar_select %p983, %s982, 1
        %s985 = smul.addr %s984, 10
        %s986 = scalar_lea.vmem %s2, %s985
      $region48: #{custom_cnn_forward.1} parent=43 // pred_fallthru
        _
    $region44: #{custom_cnn_forward.1} parent=5 // pred_fallthru
      _
  $region6: #{custom_cnn_forward.1} parent=0 // loop_footer
    %s12 = sadd.s32 1, %s8
  $region7: #{custom_cnn_forward.1} parent=0 // loop_footer_branch
    %7 = sbr.rel target = $region3
  $region8: #{custom_cnn_forward.1} parent=0 // loop_exit
    _

</llo_original>
